<compile_context>
chip_gen: v7x
topology: tpu7x:2x2x1
jax: 0.10.0
libtpu: 0.0.40
codegen_flags: <defaults>
</compile_context>

<pallas_src>
import functools

import jax
import jax.numpy as jnp
from jax.experimental import pallas as pl
from jax.experimental.pallas import tpu as pltpu


_NEG_INF = -1e30  # fill for bias lanes beyond the real class count


def _round_up(x, m):
    return ((x + m - 1) // m) * m


def _pick_tile(dim, preferred, step=128):
    """Largest multiple of `step` that divides `dim` and is <= preferred."""
    t = max(step, (min(preferred, dim) // step) * step)
    while dim % t:
        t -= step
    return t


# -----------------------------------------------------------------------------
# Kernel 1: projection  h0 = x @ W^T   (W pre-transposed on host -> [Fpad, Cpad])
# -----------------------------------------------------------------------------
def _project_kernel(x_ref, wt_ref, o_ref):
    o_ref[...] = jnp.dot(x_ref[...], wt_ref[...],
                         preferred_element_type=jnp.float32)


def _project(x_p, wt_p, *, tm):
    n_p, f_p = x_p.shape
    c_p = wt_p.shape[1]
    cost = pl.CostEstimate(
        flops=2 * n_p * f_p * c_p,
        transcendentals=0,
        bytes_accessed=4 * (n_p * f_p + f_p * c_p + n_p * c_p))
    return pl.pallas_call(
        _project_kernel,
        out_shape=jax.ShapeDtypeStruct((n_p, c_p), jnp.float32),
        grid_spec=pltpu.PrefetchScalarGridSpec(
            num_scalar_prefetch=0,
            grid=(n_p // tm,),
            in_specs=[
                pl.BlockSpec((tm, f_p), lambda i: (i, 0)),   # x row tile
                pl.BlockSpec((f_p, c_p), lambda i: (0, 0)),  # full W^T
            ],
            out_specs=pl.BlockSpec((tm, c_p), lambda i: (i, 0)),
        ),
        compiler_params=pltpu.CompilerParams(
            dimension_semantics=("parallel",),
            vmem_limit_bytes=32 * 1024 * 1024),
        cost_estimate=cost,
    )(x_p, wt_p)


# -----------------------------------------------------------------------------
# Kernel 2: one propagation layer  h <- A_hat @ h
#           (last layer fuses  + bias  and  log_softmax  into the epilogue)
# -----------------------------------------------------------------------------
def _propagate_kernel(adj_ref, h_ref, b_ref, o_ref, acc_ref, *, epilogue):
    k = pl.program_id(1)

    @pl.when(k == 0)
    def _():
        acc_ref[...] = jnp.zeros_like(acc_ref)

    acc_ref[...] += jnp.dot(adj_ref[...], h_ref[...],
                            preferred_element_type=jnp.float32)

    @pl.when(k == pl.num_programs(1) - 1)
    def _():
        if epilogue:
            # logits = A^L (x W^T) + b ; padded lanes carry -1e30 bias so they
            # vanish in the softmax sum.  Numerically stable log_softmax.
            logits = acc_ref[...] + b_ref[...]
            m = jnp.max(logits, axis=-1, keepdims=True)
            z = logits - m
            lse = jnp.log(jnp.sum(jnp.exp(z), axis=-1, keepdims=True))
            o_ref[...] = z - lse
        else:
            o_ref[...] = acc_ref[...]


def _propagate(adj_p, h_p, b_p, *, tm, tk, epilogue):
    n_p = adj_p.shape[0]
    c_p = h_p.shape[1]
    cost = pl.CostEstimate(
        flops=2 * n_p * n_p * c_p,
        transcendentals=(n_p * c_p) if epilogue else 0,
        bytes_accessed=4 * (n_p * n_p + 2 * n_p * c_p + c_p))
    kernel = functools.partial(_propagate_kernel, epilogue=epilogue)
    return pl.pallas_call(
        kernel,
        out_shape=jax.ShapeDtypeStruct((n_p, c_p), jnp.float32),
        grid_spec=pltpu.PrefetchScalarGridSpec(
            num_scalar_prefetch=0,
            grid=(n_p // tm, n_p // tk),
            in_specs=[
                pl.BlockSpec((tm, tk), lambda i, k: (i, k)),    # adjacency tile
                pl.BlockSpec((tk, c_p), lambda i, k: (k, 0)),   # activation K-slab
                pl.BlockSpec((1, c_p), lambda i, k: (0, 0)),    # bias (epilogue only)
            ],
            out_specs=pl.BlockSpec((tm, c_p), lambda i, k: (i, 0)),
            scratch_shapes=[pltpu.VMEM((tm, c_p), jnp.float32)],
        ),
        compiler_params=pltpu.CompilerParams(
            dimension_semantics=("parallel", "arbitrary"),
            vmem_limit_bytes=32 * 1024 * 1024),
        cost_estimate=cost,
    )(adj_p, h_p, b_p)


# -----------------------------------------------------------------------------
# Forward:  log_softmax( (A_hat^L x) W^T + b , axis=1 )
# -----------------------------------------------------------------------------
@functools.partial(jax.jit, static_argnames=("num_layers", "tm", "tk"))
def simple_gcn_forward(adj, x, w, b, *, num_layers=2, tm=256, tk=512):
    """adj: [N,N] f32 normalized adjacency; x: [N,F]; w: [C,F] (PyTorch layout);
    b: [C].  Returns [N, C] f32 log-probabilities."""
    n, f = x.shape
    c = w.shape[0]

    n_p = _round_up(n, 128)
    f_p = _round_up(f, 128)
    c_p = _round_up(c, 128)

    adj_p = jnp.pad(adj.astype(jnp.float32), ((0, n_p - n), (0, n_p - n)))
    x_p = jnp.pad(x.astype(jnp.float32), ((0, n_p - n), (0, f_p - f)))
    wt_p = jnp.pad(w.astype(jnp.float32).T, ((0, f_p - f), (0, c_p - c)))
    b_p = jnp.pad(b.astype(jnp.float32), (0, c_p - c),
                  constant_values=_NEG_INF).reshape(1, c_p)

    tm_r = _pick_tile(n_p, tm)
    tk_r = _pick_tile(n_p, tk)

    # Project first (propagation is linear):  h0 = x @ W^T  -> [Npad, Cpad].
    h = _project(x_p, wt_p, tm=tm_r)

    # L propagations; the last one fuses bias + log_softmax.
    for layer in range(num_layers):
        h = _propagate(adj_p, h, b_p, tm=tm_r, tk=tk_r,
                       epilogue=(layer == num_layers - 1))

    return h[:n, :c]


# -----------------------------------------------------------------------------
# Glue: build D^{-1/2} (A + I) D^{-1/2} from an edge_index (plain JAX).
# Duplicate edges accumulate (one message per edge, PyG-style).
# TODO(synk): explicit pre-existing self-loops would get diagonal weight 2;
# PyG's add_remaining_self_loops would skip those.
# -----------------------------------------------------------------------------
def build_norm_adj(edge_index, num_nodes):
    src, dst = edge_index[0], edge_index[1]
    a = jnp.zeros((num_nodes, num_nodes), jnp.float32)
    a = a.at[dst, src].add(1.0)                       # message src -> dst
    a = a + jnp.eye(num_nodes, dtype=jnp.float32)     # add self-loops
    deg = jnp.sum(a, axis=1)
    d_inv_sqrt = jnp.where(deg > 0, 1.0 / jnp.sqrt(deg), 0.0)
    return d_inv_sqrt[:, None] * a * d_inv_sqrt[None, :]


def reference_forward(adj, x, w, b, *, num_layers=2):
    hp = jax.lax.Precision.HIGHEST
    for _ in range(num_layers):
        x = jnp.dot(adj, x, precision=hp)
    logits = jnp.dot(x, w.T, precision=hp) + b[None, :]
    return jax.nn.log_softmax(logits, axis=1)


if __name__ == "__main__":
    # Small synthetic "dataset": N nodes, F node features, C classes.
    N, F_IN, C = 64, 32, 8
    NUM_LAYERS = 2
    NUM_EDGES = 256

    key = jax.random.PRNGKey(0)
    k_x, k_e, k_w, k_b = jax.random.split(key, 4)

    x = jax.random.normal(k_x, (N, F_IN), dtype=jnp.float32)
    edge_index = jax.random.randint(k_e, (2, NUM_EDGES), 0, N, dtype=jnp.int32)

    # Deterministic Linear(F_IN, C) parameters (PyTorch layout: w is [C, F]).
    bound = 1.0 / jnp.sqrt(jnp.float32(F_IN))
    w = jax.random.uniform(k_w, (C, F_IN), jnp.float32, -bound, bound)
    b = jax.random.uniform(k_b, (C,), jnp.float32, -bound, bound)

    adj = build_norm_adj(edge_index, N)

    out = simple_gcn_forward(adj, x, w, b, num_layers=NUM_LAYERS)
    out = jax.block_until_ready(out)

    ref = reference_forward(adj, x, w, b, num_layers=NUM_LAYERS)
    assert out.shape == (N, C)
    assert bool(jnp.all(jnp.isfinite(out)))
    assert jnp.allclose(out, ref, atol=2e-4, rtol=2e-4)

    print("KERNEL_OK")
</pallas_src>

<mosaic_0001>
module attributes {stable_mosaic.version = 11 : i64} {
  func.func @_project_kernel(%arg0: i32, %arg1: memref<128x128xf32, #tpu.memory_space<vmem>>, %arg2: memref<128x128xf32, #tpu.memory_space<vmem>>, %arg3: memref<128x128xf32, #tpu.memory_space<vmem>>) attributes {dimension_semantics = [#tpu.dimension_semantics<parallel>], iteration_bounds = array<i64: 1>, scalar_prefetch = 0 : i64, scratch_operands = 0 : i64, tpu.core_type = #tpu.core_type<tc>, window_params = [{transform_indices = @transform_0, window_bounds = array<i64: 128, 128>}, {pipeline_mode = #tpu.pipeline_mode<synchronous>, transform_indices = @transform_1, window_bounds = array<i64: 128, 128>}, {transform_indices = @transform_2, window_bounds = array<i64: 128, 128>}]} {
    %c0 = arith.constant 0 : index
    %c0_0 = arith.constant 0 : index
    %0 = vector.load %arg1[%c0, %c0_0] : memref<128x128xf32, #tpu.memory_space<vmem>>, vector<128x128xf32>
    %c0_1 = arith.constant 0 : index
    %c0_2 = arith.constant 0 : index
    %1 = vector.load %arg2[%c0_1, %c0_2] : memref<128x128xf32, #tpu.memory_space<vmem>>, vector<128x128xf32>
    %cst = arith.constant dense<0.000000e+00> : vector<128x128xf32>
    %2 = tpu.matmul %0, %1, %cst {dimension_numbers = #tpu.dot_dimension_numbers<[1], [0], [0], [1], [0, 0, 1, 1], [], []>} : vector<128x128xf32>, vector<128x128xf32>, vector<128x128xf32> -> vector<128x128xf32>
    %c0_3 = arith.constant 0 : index
    %c0_4 = arith.constant 0 : index
    %3 = vector.load %arg3[%c0_3, %c0_4] : memref<128x128xf32, #tpu.memory_space<vmem>>, vector<128x128xf32>
    tpu.vector_store %arg3[%c0_3, %c0_4], %2 {strides = array<i32>} : memref<128x128xf32, #tpu.memory_space<vmem>>, vector<128x128xf32>,
    return
  }
  func.func @transform_0(%arg0: i32) -> (i32, i32) {
    %c0_i32 = arith.constant 0 : i32
    %c0_i32_0 = arith.constant 0 : i32
    return %arg0, %c0_i32 : i32, i32
  }
  func.func @transform_1(%arg0: i32) -> (i32, i32) {
    %c0_i32 = arith.constant 0 : i32
    %c0_i32_0 = arith.constant 0 : i32
    %c0_i32_1 = arith.constant 0 : i32
    return %c0_i32, %c0_i32_0 : i32, i32
  }
  func.func @transform_2(%arg0: i32) -> (i32, i32) {
    %c0_i32 = arith.constant 0 : i32
    %c0_i32_0 = arith.constant 0 : i32
    return %arg0, %c0_i32 : i32, i32
  }
}

module attributes {stable_mosaic.version = 11 : i64} {
  func.func @_propagate_kernel(%arg0: i32, %arg1: i32, %arg2: memref<128x128xf32, #tpu.memory_space<vmem>>, %arg3: memref<128x128xf32, #tpu.memory_space<vmem>>, %arg4: memref<1x128xf32, #tpu.memory_space<vmem>>, %arg5: memref<128x128xf32, #tpu.memory_space<vmem>>, %arg6: memref<128x128xf32, #tpu.memory_space<vmem>>) attributes {dimension_semantics = [#tpu.dimension_semantics<parallel>, #tpu.dimension_semantics<arbitrary>], iteration_bounds = array<i64: 1, 1>, scalar_prefetch = 0 : i64, scratch_operands = 1 : i64, tpu.core_type = #tpu.core_type<tc>, window_params = [{transform_indices = @transform_0, window_bounds = array<i64: 128, 128>}, {transform_indices = @transform_1, window_bounds = array<i64: 128, 128>}, {pipeline_mode = #tpu.pipeline_mode<synchronous>, transform_indices = @transform_2, window_bounds = array<i64: 1, 128>}, {transform_indices = @transform_3, window_bounds = array<i64: 128, 128>}]} {
    %c0_i32 = arith.constant 0 : i32
    %0 = arith.cmpi eq, %arg1, %c0_i32 : i32
    %1 = arith.extui %0 : i1 to i32
    %c0_i32_0 = arith.constant 0 : i32
    %2 = arith.cmpi ne, %1, %c0_i32_0 : i32
    scf.if %2 {
      %cst_10 = arith.constant 0.000000e+00 : f32
      %12 = vector.broadcast %cst_10 : f32 to vector<128x128xf32>
      %c0_11 = arith.constant 0 : index
      %c0_12 = arith.constant 0 : index
      %13 = vector.load %arg6[%c0_11, %c0_12] : memref<128x128xf32, #tpu.memory_space<vmem>>, vector<128x128xf32>
      tpu.vector_store %arg6[%c0_11, %c0_12], %12 {strides = array<i32>} : memref<128x128xf32, #tpu.memory_space<vmem>>, vector<128x128xf32>,
    } else {
    }
    %c0 = arith.constant 0 : index
    %c0_1 = arith.constant 0 : index
    %3 = vector.load %arg6[%c0, %c0_1] : memref<128x128xf32, #tpu.memory_space<vmem>>, vector<128x128xf32>
    %c0_2 = arith.constant 0 : index
    %c0_3 = arith.constant 0 : index
    %4 = vector.load %arg2[%c0_2, %c0_3] : memref<128x128xf32, #tpu.memory_space<vmem>>, vector<128x128xf32>
    %c0_4 = arith.constant 0 : index
    %c0_5 = arith.constant 0 : index
    %5 = vector.load %arg3[%c0_4, %c0_5] : memref<128x128xf32, #tpu.memory_space<vmem>>, vector<128x128xf32>
    %cst = arith.constant dense<0.000000e+00> : vector<128x128xf32>
    %6 = tpu.matmul %4, %5, %cst {dimension_numbers = #tpu.dot_dimension_numbers<[1], [0], [0], [1], [0, 0, 1, 1], [], []>} : vector<128x128xf32>, vector<128x128xf32>, vector<128x128xf32> -> vector<128x128xf32>
    %7 = arith.addf %3, %6 : vector<128x128xf32>
    %c0_6 = arith.constant 0 : index
    %c0_7 = arith.constant 0 : index
    %8 = vector.load %arg6[%c0_6, %c0_7] : memref<128x128xf32, #tpu.memory_space<vmem>>, vector<128x128xf32>
    tpu.vector_store %arg6[%c0_6, %c0_7], %7 {strides = array<i32>} : memref<128x128xf32, #tpu.memory_space<vmem>>, vector<128x128xf32>,
    %c0_i32_8 = arith.constant 0 : i32
    %9 = arith.cmpi eq, %arg1, %c0_i32_8 : i32
    %10 = arith.extui %9 : i1 to i32
    %c0_i32_9 = arith.constant 0 : i32
    %11 = arith.cmpi ne, %10, %c0_i32_9 : i32
    scf.if %11 {
      %c0_10 = arith.constant 0 : index
      %c0_11 = arith.constant 0 : index
      %12 = vector.load %arg6[%c0_10, %c0_11] : memref<128x128xf32, #tpu.memory_space<vmem>>, vector<128x128xf32>
      %c0_12 = arith.constant 0 : index
      %c0_13 = arith.constant 0 : index
      %13 = vector.load %arg4[%c0_12, %c0_13] : memref<1x128xf32, #tpu.memory_space<vmem>>, vector<1x128xf32>
      %14 = vector.broadcast %13 : vector<1x128xf32> to vector<128x128xf32>
      %15 = arith.addf %12, %14 : vector<128x128xf32>
      %cst_14 = arith.constant dense<0xFF800000> : vector<128xf32>
      %16 = vector.multi_reduction <maximumf>, %15, %cst_14 [1] : vector<128x128xf32> to vector<128xf32>
      %17 = vector.shape_cast %16 : vector<128xf32> to vector<128x1xf32>
      %18 = vector.broadcast %17 : vector<128x1xf32> to vector<128x128xf32>
      %19 = arith.subf %15, %18 : vector<128x128xf32>
      %20 = math.exp %19 : vector<128x128xf32>
      %cst_15 = arith.constant dense<0.000000e+00> : vector<128xf32>
      %21 = vector.multi_reduction <add>, %20, %cst_15 [1] : vector<128x128xf32> to vector<128xf32>
      %22 = vector.shape_cast %21 : vector<128xf32> to vector<128x1xf32>
      %23 = math.log %22 : vector<128x1xf32>
      %24 = vector.broadcast %23 : vector<128x1xf32> to vector<128x128xf32>
      %25 = arith.subf %19, %24 : vector<128x128xf32>
      %c0_16 = arith.constant 0 : index
      %c0_17 = arith.constant 0 : index
      %26 = vector.load %arg5[%c0_16, %c0_17] : memref<128x128xf32, #tpu.memory_space<vmem>>, vector<128x128xf32>
      tpu.vector_store %arg5[%c0_16, %c0_17], %25 {strides = array<i32>} : memref<128x128xf32, #tpu.memory_space<vmem>>, vector<128x128xf32>,
    } else {
    }
    return
  }
  func.func @transform_0(%arg0: i32, %arg1: i32) -> (i32, i32) {
    %c0_i32 = arith.constant 0 : i32
    return %arg0, %arg1 : i32, i32
  }
  func.func @transform_1(%arg0: i32, %arg1: i32) -> (i32, i32) {
    %c0_i32 = arith.constant 0 : i32
    %c0_i32_0 = arith.constant 0 : i32
    return %arg1, %c0_i32 : i32, i32
  }
  func.func @transform_2(%arg0: i32, %arg1: i32) -> (i32, i32) {
    %c0_i32 = arith.constant 0 : i32
    %c0_i32_0 = arith.constant 0 : i32
    %c0_i32_1 = arith.constant 0 : i32
    return %c0_i32, %c0_i32_0 : i32, i32
  }
  func.func @transform_3(%arg0: i32, %arg1: i32) -> (i32, i32) {
    %c0_i32 = arith.constant 0 : i32
    %c0_i32_0 = arith.constant 0 : i32
    return %arg0, %c0_i32 : i32, i32
  }
}

module attributes {stable_mosaic.version = 11 : i64} {
  func.func @_propagate_kernel(%arg0: i32, %arg1: i32, %arg2: memref<128x128xf32, #tpu.memory_space<vmem>>, %arg3: memref<128x128xf32, #tpu.memory_space<vmem>>, %arg4: memref<1x128xf32, #tpu.memory_space<vmem>>, %arg5: memref<128x128xf32, #tpu.memory_space<vmem>>, %arg6: memref<128x128xf32, #tpu.memory_space<vmem>>) attributes {dimension_semantics = [#tpu.dimension_semantics<parallel>, #tpu.dimension_semantics<arbitrary>], iteration_bounds = array<i64: 1, 1>, scalar_prefetch = 0 : i64, scratch_operands = 1 : i64, tpu.core_type = #tpu.core_type<tc>, window_params = [{transform_indices = @transform_0, window_bounds = array<i64: 128, 128>}, {transform_indices = @transform_1, window_bounds = array<i64: 128, 128>}, {pipeline_mode = #tpu.pipeline_mode<synchronous>, transform_indices = @transform_2, window_bounds = array<i64: 1, 128>}, {transform_indices = @transform_3, window_bounds = array<i64: 128, 128>}]} {
    %c0_i32 = arith.constant 0 : i32
    %0 = arith.cmpi eq, %arg1, %c0_i32 : i32
    %1 = arith.extui %0 : i1 to i32
    %c0_i32_0 = arith.constant 0 : i32
    %2 = arith.cmpi ne, %1, %c0_i32_0 : i32
    scf.if %2 {
      %cst_10 = arith.constant 0.000000e+00 : f32
      %12 = vector.broadcast %cst_10 : f32 to vector<128x128xf32>
      %c0_11 = arith.constant 0 : index
      %c0_12 = arith.constant 0 : index
      %13 = vector.load %arg6[%c0_11, %c0_12] : memref<128x128xf32, #tpu.memory_space<vmem>>, vector<128x128xf32>
      tpu.vector_store %arg6[%c0_11, %c0_12], %12 {strides = array<i32>} : memref<128x128xf32, #tpu.memory_space<vmem>>, vector<128x128xf32>,
    } else {
    }
    %c0 = arith.constant 0 : index
    %c0_1 = arith.constant 0 : index
    %3 = vector.load %arg6[%c0, %c0_1] : memref<128x128xf32, #tpu.memory_space<vmem>>, vector<128x128xf32>
    %c0_2 = arith.constant 0 : index
    %c0_3 = arith.constant 0 : index
    %4 = vector.load %arg2[%c0_2, %c0_3] : memref<128x128xf32, #tpu.memory_space<vmem>>, vector<128x128xf32>
    %c0_4 = arith.constant 0 : index
    %c0_5 = arith.constant 0 : index
    %5 = vector.load %arg3[%c0_4, %c0_5] : memref<128x128xf32, #tpu.memory_space<vmem>>, vector<128x128xf32>
    %cst = arith.constant dense<0.000000e+00> : vector<128x128xf32>
    %6 = tpu.matmul %4, %5, %cst {dimension_numbers = #tpu.dot_dimension_numbers<[1], [0], [0], [1], [0, 0, 1, 1], [], []>} : vector<128x128xf32>, vector<128x128xf32>, vector<128x128xf32> -> vector<128x128xf32>
    %7 = arith.addf %3, %6 : vector<128x128xf32>
    %c0_6 = arith.constant 0 : index
    %c0_7 = arith.constant 0 : index
    %8 = vector.load %arg6[%c0_6, %c0_7] : memref<128x128xf32, #tpu.memory_space<vmem>>, vector<128x128xf32>
    tpu.vector_store %arg6[%c0_6, %c0_7], %7 {strides = array<i32>} : memref<128x128xf32, #tpu.memory_space<vmem>>, vector<128x128xf32>,
    %c0_i32_8 = arith.constant 0 : i32
    %9 = arith.cmpi eq, %arg1, %c0_i32_8 : i32
    %10 = arith.extui %9 : i1 to i32
    %c0_i32_9 = arith.constant 0 : i32
    %11 = arith.cmpi ne, %10, %c0_i32_9 : i32
    scf.if %11 {
      %c0_10 = arith.constant 0 : index
      %c0_11 = arith.constant 0 : index
      %12 = vector.load %arg6[%c0_10, %c0_11] : memref<128x128xf32, #tpu.memory_space<vmem>>, vector<128x128xf32>
      %c0_12 = arith.constant 0 : index
      %c0_13 = arith.constant 0 : index
      %13 = vector.load %arg5[%c0_12, %c0_13] : memref<128x128xf32, #tpu.memory_space<vmem>>, vector<128x128xf32>
      tpu.vector_store %arg5[%c0_12, %c0_13], %12 {strides = array<i32>} : memref<128x128xf32, #tpu.memory_space<vmem>>, vector<128x128xf32>,
    } else {
    }
    return
  }
  func.func @transform_0(%arg0: i32, %arg1: i32) -> (i32, i32) {
    %c0_i32 = arith.constant 0 : i32
    return %arg0, %arg1 : i32, i32
  }
  func.func @transform_1(%arg0: i32, %arg1: i32) -> (i32, i32) {
    %c0_i32 = arith.constant 0 : i32
    %c0_i32_0 = arith.constant 0 : i32
    return %arg1, %c0_i32 : i32, i32
  }
  func.func @transform_2(%arg0: i32, %arg1: i32) -> (i32, i32) {
    %c0_i32 = arith.constant 0 : i32
    %c0_i32_0 = arith.constant 0 : i32
    %c0_i32_1 = arith.constant 0 : i32
    return %c0_i32, %c0_i32_0 : i32, i32
  }
  func.func @transform_3(%arg0: i32, %arg1: i32) -> (i32, i32) {
    %c0_i32 = arith.constant 0 : i32
    %c0_i32_0 = arith.constant 0 : i32
    return %arg0, %c0_i32 : i32, i32
  }
}

</mosaic_0001>

<llo_original>
// kernel: simple_gcn_forward.5
$region0: #{simple_gcn_forward.5}
  #allocation0 [shape = 'u32[]', space=smem, size = 0x4, offset = 0x4, fixed_abs, tag = 'smem constant byte address 0x4 - core index']
  #allocation1 [shape = 'u32[144,128]{1,0:T(1,128)}', space=vmem, size = 0x12000, scoped, tag = 'internal scratch']
  #allocation2 [shape = 'f32[128,128]{1,0:T(8,128)}', space=vmem, size = 0x10000, scoped, tag = 'scratch operand']
  %s0 = inlined_call_operand.vmem [shape: f32[128,128], index: 0, kind: input, shape index: {}]
  %s1 = inlined_call_operand.vmem [shape: f32[128,128], index: 1, kind: input, shape index: {}]
  %s2 = inlined_call_operand.vmem [shape: f32[1,128], index: 2, kind: input, shape index: {}]
  %s3 = inlined_call_operand.vmem [shape: f32[128,128], index: 3, kind: output, shape index: {}]
  %s4 = sld [smem:[#allocation0]]
  $region30: #{simple_gcn_forward.5} parent=0
    _
  %s6 = ssub.s32 1, %s4
  %s7 = scalar_select 0, %s6, %s4
  // Predicated region
  $region2: #{simple_gcn_forward.5} parent=0 // pred_check
    _
  $region3: #{simple_gcn_forward.5} parent=0 // pred_check_branch
    %9 = sbr.rel (0) target = $region5
  $region4: #{simple_gcn_forward.5} parent=0 // pred_region
    _
  $region5: #{simple_gcn_forward.5} parent=0 // pred_fallthru
    _
  // Predicated region
  $region6: #{simple_gcn_forward.5} parent=0 // pred_check
    _
  $region7: #{simple_gcn_forward.5} parent=0 // pred_check_branch
    %11 = sbr.rel (0) target = $region9
  $region8: #{simple_gcn_forward.5} parent=0 // pred_region
    _
  $region9: #{simple_gcn_forward.5} parent=0 // pred_fallthru
    _
  // Predicated region
  $region10: #{simple_gcn_forward.5} parent=0 // pred_check
    _
  $region11: #{simple_gcn_forward.5} parent=0 // pred_check_branch
    %13 = sbr.rel (0) target = $region13
  $region12: #{simple_gcn_forward.5} parent=0 // pred_region
    _
  $region13: #{simple_gcn_forward.5} parent=0 // pred_fallthru
    _
  %p14 = scmp.eq.s32.totalorder 0, 0
  // Predicated region
  $region14: #{simple_gcn_forward.5} parent=0 // pred_check
    %p15 = pneg %p14
  $region15: #{simple_gcn_forward.5} parent=0 // pred_check_branch
    %17 = sbr.rel (%p15) target = $region17
  $region16: #{simple_gcn_forward.5} parent=0 // pred_region
    %18 = vst [vmem:[#allocation2] sm:$0xff] 0.0
    %19 = vst [vmem:[#allocation2 + $0x8] sm:$0xff] 0.0
    %20 = vst [vmem:[#allocation2 + $0x10] sm:$0xff] 0.0
    %21 = vst [vmem:[#allocation2 + $0x18] sm:$0xff] 0.0
    %22 = vst [vmem:[#allocation2 + $0x20] sm:$0xff] 0.0
    %23 = vst [vmem:[#allocation2 + $0x28] sm:$0xff] 0.0
    %24 = vst [vmem:[#allocation2 + $0x30] sm:$0xff] 0.0
    %25 = vst [vmem:[#allocation2 + $0x38] sm:$0xff] 0.0
    %26 = vst [vmem:[#allocation2 + $0x40] sm:$0xff] 0.0
    %27 = vst [vmem:[#allocation2 + $0x48] sm:$0xff] 0.0
    %28 = vst [vmem:[#allocation2 + $0x50] sm:$0xff] 0.0
    %29 = vst [vmem:[#allocation2 + $0x58] sm:$0xff] 0.0
    %30 = vst [vmem:[#allocation2 + $0x60] sm:$0xff] 0.0
    %31 = vst [vmem:[#allocation2 + $0x68] sm:$0xff] 0.0
    %32 = vst [vmem:[#allocation2 + $0x70] sm:$0xff] 0.0
    %33 = vst [vmem:[#allocation2 + $0x78] sm:$0xff] 0.0
  $region17: #{simple_gcn_forward.5} parent=0 // pred_fallthru
    _
  %v34 = vld [vmem:[#allocation2] sm:$0xff]
  %v35 = vld [vmem:[#allocation2 + $0x8] sm:$0xff]
  %v36 = vld [vmem:[#allocation2 + $0x10] sm:$0xff]
  %v37 = vld [vmem:[#allocation2 + $0x18] sm:$0xff]
  %v38 = vld [vmem:[#allocation2 + $0x20] sm:$0xff]
  %v39 = vld [vmem:[#allocation2 + $0x28] sm:$0xff]
  %v40 = vld [vmem:[#allocation2 + $0x30] sm:$0xff]
  %v41 = vld [vmem:[#allocation2 + $0x38] sm:$0xff]
  %v42 = vld [vmem:[#allocation2 + $0x40] sm:$0xff]
  %v43 = vld [vmem:[#allocation2 + $0x48] sm:$0xff]
  %v44 = vld [vmem:[#allocation2 + $0x50] sm:$0xff]
  %v45 = vld [vmem:[#allocation2 + $0x58] sm:$0xff]
  %v46 = vld [vmem:[#allocation2 + $0x60] sm:$0xff]
  %v47 = vld [vmem:[#allocation2 + $0x68] sm:$0xff]
  %v48 = vld [vmem:[#allocation2 + $0x70] sm:$0xff]
  %v49 = vld [vmem:[#allocation2 + $0x78] sm:$0xff]
  %v50 = vld [vmem:[%s0] sm:$0xff]
  %v51 = vld [vmem:[%s0 + $0x8] sm:$0xff]
  %v52 = vld [vmem:[%s0 + $0x10] sm:$0xff]
  %v53 = vld [vmem:[%s0 + $0x18] sm:$0xff]
  %v54 = vld [vmem:[%s0 + $0x20] sm:$0xff]
  %v55 = vld [vmem:[%s0 + $0x28] sm:$0xff]
  %v56 = vld [vmem:[%s0 + $0x30] sm:$0xff]
  %v57 = vld [vmem:[%s0 + $0x38] sm:$0xff]
  %v58 = vld [vmem:[%s0 + $0x40] sm:$0xff]
  %v59 = vld [vmem:[%s0 + $0x48] sm:$0xff]
  %v60 = vld [vmem:[%s0 + $0x50] sm:$0xff]
  %v61 = vld [vmem:[%s0 + $0x58] sm:$0xff]
  %v62 = vld [vmem:[%s0 + $0x60] sm:$0xff]
  %v63 = vld [vmem:[%s0 + $0x68] sm:$0xff]
  %v64 = vld [vmem:[%s0 + $0x70] sm:$0xff]
  %v65 = vld [vmem:[%s0 + $0x78] sm:$0xff]
  %v66 = vld [vmem:[%s1] sm:$0xff]
  %v67 = vld [vmem:[%s1 + $0x8] sm:$0xff]
  %v68 = vld [vmem:[%s1 + $0x10] sm:$0xff]
  %v69 = vld [vmem:[%s1 + $0x18] sm:$0xff]
  %v70 = vld [vmem:[%s1 + $0x20] sm:$0xff]
  %v71 = vld [vmem:[%s1 + $0x28] sm:$0xff]
  %v72 = vld [vmem:[%s1 + $0x30] sm:$0xff]
  %v73 = vld [vmem:[%s1 + $0x38] sm:$0xff]
  %v74 = vld [vmem:[%s1 + $0x40] sm:$0xff]
  %v75 = vld [vmem:[%s1 + $0x48] sm:$0xff]
  %v76 = vld [vmem:[%s1 + $0x50] sm:$0xff]
  %v77 = vld [vmem:[%s1 + $0x58] sm:$0xff]
  %v78 = vld [vmem:[%s1 + $0x60] sm:$0xff]
  %v79 = vld [vmem:[%s1 + $0x68] sm:$0xff]
  %v80 = vld [vmem:[%s1 + $0x70] sm:$0xff]
  %v81 = vld [vmem:[%s1 + $0x78] sm:$0xff]
  %82 = vmatprep.subr.mxu0 0.0
  %83 = vmatpush1.msra.mxu0 %v66
  %84 = vmatprep.subr.mxu0 0.0
  %85 = vmatpush1.msra.mxu0 %v67
  %86 = vmatprep.subr.mxu0 0.0
  %87 = vmatpush1.msra.mxu0 %v68
  %88 = vmatprep.subr.mxu0 0.0
  %89 = vmatpush1.msra.mxu0 %v69
  %90 = vmatprep.subr.mxu0 0.0
  %91 = vmatpush1.msra.mxu0 %v70
  %92 = vmatprep.subr.mxu0 0.0
  %93 = vmatpush1.msra.mxu0 %v71
  %94 = vmatprep.subr.mxu0 0.0
  %95 = vmatpush1.msra.mxu0 %v72
  %96 = vmatprep.subr.mxu0 0.0
  %97 = vmatpush1.msra.mxu0 %v73
  %98 = vmatprep.subr.mxu0 0.0
  %99 = vmatpush1.msra.mxu0 %v74
  %100 = vmatprep.subr.mxu0 0.0
  %101 = vmatpush1.msra.mxu0 %v75
  %102 = vmatprep.subr.mxu0 0.0
  %103 = vmatpush1.msra.mxu0 %v76
  %104 = vmatprep.subr.mxu0 0.0
  %105 = vmatpush1.msra.mxu0 %v77
  %106 = vmatprep.subr.mxu0 0.0
  %107 = vmatpush1.msra.mxu0 %v78
  %108 = vmatprep.subr.mxu0 0.0
  %109 = vmatpush1.msra.mxu0 %v79
  %110 = vmatprep.subr.mxu0 0.0
  %111 = vmatpush1.msra.mxu0 %v80
  %112 = vmatprep.subr.mxu0 0.0
  %113 = vmatpush1.msra.mxu0 %v81
  %114 = vmatprep.subr.mxu0 0.0
  %115 = vmatpush1.msra.mxu0 0.0
  %116 = vmatprep.subr.mxu0 0.0
  %117 = vmatpush1.msra.mxu0 0.0
  %118 = vmatprep.subr.mxu0 0.0
  %119 = vmatpush1.msra.mxu0 0.0
  %120 = vmatprep.subr.mxu0 0.0
  %121 = vmatpush1.msra.mxu0 0.0
  %122 = vmatprep.subr.mxu0 0.0
  %123 = vmatpush1.msra.mxu0 0.0
  %124 = vmatprep.subr.mxu0 0.0
  %125 = vmatpush1.msra.mxu0 0.0
  %126 = vmatprep.subr.mxu0 0.0
  %127 = vmatpush1.msra.mxu0 0.0
  %128 = vmatprep.subr.mxu0 0.0
  %129 = vmatpush1.msra.mxu0 0.0
  %130 = vmatprep.subr.mxu0 0.0
  %131 = vmatpush1.msra.mxu0 0.0
  %132 = vmatprep.subr.mxu0 0.0
  %133 = vmatpush1.msra.mxu0 0.0
  %134 = vmatprep.subr.mxu0 0.0
  %135 = vmatpush1.msra.mxu0 0.0
  %136 = vmatprep.subr.mxu0 0.0
  %137 = vmatpush1.msra.mxu0 0.0
  %138 = vmatprep.subr.mxu0 0.0
  %139 = vmatpush1.msra.mxu0 0.0
  %140 = vmatprep.subr.mxu0 0.0
  %141 = vmatpush1.msra.mxu0 0.0
  %142 = vmatprep.subr.mxu0 0.0
  %143 = vmatpush1.msra.mxu0 0.0
  %144 = vmatprep.subr.mxu0 0.0
  %145 = vmatpush1.msra.mxu0 0.0
  %146 = vmatprep.mubr.f32.mxu0 0.0
  %147 = vmatmul.mubr.f32.gmra.mrb[0].mxu0 %v50
  %v148 = vpop.f32.mrb[0].mxu0
  %v149 = vadd.f32 0.0, %v148
  %v150 = vpop.f32.mrb[0].mxu0
  %151 = vmatprep.mubr.f32.mxu0 0.0
  %152 = vmatmul.mubr.f32.gmra.mrb[0].mxu0 %v51
  %v153 = vpop.f32.mrb[0].mxu0
  %v154 = vadd.f32 0.0, %v153
  %v155 = vpop.f32.mrb[0].mxu0
  %156 = vmatprep.mubr.f32.mxu0 0.0
  %157 = vmatmul.mubr.f32.gmra.mrb[0].mxu0 %v52
  %v158 = vpop.f32.mrb[0].mxu0
  %v159 = vadd.f32 0.0, %v158
  %v160 = vpop.f32.mrb[0].mxu0
  %161 = vmatprep.mubr.f32.mxu0 0.0
  %162 = vmatmul.mubr.f32.gmra.mrb[0].mxu0 %v53
  %v163 = vpop.f32.mrb[0].mxu0
  %v164 = vadd.f32 0.0, %v163
  %v165 = vpop.f32.mrb[0].mxu0
  %166 = vmatprep.mubr.f32.mxu0 0.0
  %167 = vmatmul.mubr.f32.gmra.mrb[0].mxu0 %v54
  %v168 = vpop.f32.mrb[0].mxu0
  %v169 = vadd.f32 0.0, %v168
  %v170 = vpop.f32.mrb[0].mxu0
  %171 = vmatprep.mubr.f32.mxu0 0.0
  %172 = vmatmul.mubr.f32.gmra.mrb[0].mxu0 %v55
  %v173 = vpop.f32.mrb[0].mxu0
  %v174 = vadd.f32 0.0, %v173
  %v175 = vpop.f32.mrb[0].mxu0
  %176 = vmatprep.mubr.f32.mxu0 0.0
  %177 = vmatmul.mubr.f32.gmra.mrb[0].mxu0 %v56
  %v178 = vpop.f32.mrb[0].mxu0
  %v179 = vadd.f32 0.0, %v178
  %v180 = vpop.f32.mrb[0].mxu0
  %181 = vmatprep.mubr.f32.mxu0 0.0
  %182 = vmatmul.mubr.f32.gmra.mrb[0].mxu0 %v57
  %v183 = vpop.f32.mrb[0].mxu0
  %v184 = vadd.f32 0.0, %v183
  %v185 = vpop.f32.mrb[0].mxu0
  %186 = vmatprep.mubr.f32.mxu0 0.0
  %187 = vmatmul.mubr.f32.gmra.mrb[0].mxu0 %v58
  %v188 = vpop.f32.mrb[0].mxu0
  %v189 = vadd.f32 0.0, %v188
  %v190 = vpop.f32.mrb[0].mxu0
  %191 = vmatprep.mubr.f32.mxu0 0.0
  %192 = vmatmul.mubr.f32.gmra.mrb[0].mxu0 %v59
  %v193 = vpop.f32.mrb[0].mxu0
  %v194 = vadd.f32 0.0, %v193
  %v195 = vpop.f32.mrb[0].mxu0
  %196 = vmatprep.mubr.f32.mxu0 0.0
  %197 = vmatmul.mubr.f32.gmra.mrb[0].mxu0 %v60
  %v198 = vpop.f32.mrb[0].mxu0
  %v199 = vadd.f32 0.0, %v198
  %v200 = vpop.f32.mrb[0].mxu0
  %201 = vmatprep.mubr.f32.mxu0 0.0
  %202 = vmatmul.mubr.f32.gmra.mrb[0].mxu0 %v61
  %v203 = vpop.f32.mrb[0].mxu0
  %v204 = vadd.f32 0.0, %v203
  %v205 = vpop.f32.mrb[0].mxu0
  %206 = vmatprep.mubr.f32.mxu0 0.0
  %207 = vmatmul.mubr.f32.gmra.mrb[0].mxu0 %v62
  %v208 = vpop.f32.mrb[0].mxu0
  %v209 = vadd.f32 0.0, %v208
  %v210 = vpop.f32.mrb[0].mxu0
  %211 = vmatprep.mubr.f32.mxu0 0.0
  %212 = vmatmul.mubr.f32.gmra.mrb[0].mxu0 %v63
  %v213 = vpop.f32.mrb[0].mxu0
  %v214 = vadd.f32 0.0, %v213
  %v215 = vpop.f32.mrb[0].mxu0
  %216 = vmatprep.mubr.f32.mxu0 0.0
  %217 = vmatmul.mubr.f32.gmra.mrb[0].mxu0 %v64
  %v218 = vpop.f32.mrb[0].mxu0
  %v219 = vadd.f32 0.0, %v218
  %v220 = vpop.f32.mrb[0].mxu0
  %221 = vmatprep.mubr.f32.mxu0 0.0
  %222 = vmatmul.mubr.f32.gmra.mrb[0].mxu0 %v65
  %v223 = vpop.f32.mrb[0].mxu0
  %v224 = vadd.f32 0.0, %v223
  %v225 = vpop.f32.mrb[0].mxu0
  %226 = vdwg.mxu0
  %v227 = vadd.f32 %v34, %v149
  %v228 = vadd.f32 %v35, %v154
  %v229 = vadd.f32 %v36, %v159
  %v230 = vadd.f32 %v37, %v164
  %v231 = vadd.f32 %v38, %v169
  %v232 = vadd.f32 %v39, %v174
  %v233 = vadd.f32 %v40, %v179
  %v234 = vadd.f32 %v41, %v184
  %v235 = vadd.f32 %v42, %v189
  %v236 = vadd.f32 %v43, %v194
  %v237 = vadd.f32 %v44, %v199
  %v238 = vadd.f32 %v45, %v204
  %v239 = vadd.f32 %v46, %v209
  %v240 = vadd.f32 %v47, %v214
  %v241 = vadd.f32 %v48, %v219
  %v242 = vadd.f32 %v49, %v224
  %243 = vst [vmem:[#allocation2] sm:$0xff] %v227
  %244 = vst [vmem:[#allocation2 + $0x8] sm:$0xff] %v228
  %245 = vst [vmem:[#allocation2 + $0x10] sm:$0xff] %v229
  %246 = vst [vmem:[#allocation2 + $0x18] sm:$0xff] %v230
  %247 = vst [vmem:[#allocation2 + $0x20] sm:$0xff] %v231
  %248 = vst [vmem:[#allocation2 + $0x28] sm:$0xff] %v232
  %249 = vst [vmem:[#allocation2 + $0x30] sm:$0xff] %v233
  %250 = vst [vmem:[#allocation2 + $0x38] sm:$0xff] %v234
  %251 = vst [vmem:[#allocation2 + $0x40] sm:$0xff] %v235
  %252 = vst [vmem:[#allocation2 + $0x48] sm:$0xff] %v236
  %253 = vst [vmem:[#allocation2 + $0x50] sm:$0xff] %v237
  %254 = vst [vmem:[#allocation2 + $0x58] sm:$0xff] %v238
  %255 = vst [vmem:[#allocation2 + $0x60] sm:$0xff] %v239
  %256 = vst [vmem:[#allocation2 + $0x68] sm:$0xff] %v240
  %257 = vst [vmem:[#allocation2 + $0x70] sm:$0xff] %v241
  %258 = vst [vmem:[#allocation2 + $0x78] sm:$0xff] %v242
  // Predicated region
  $region18: #{simple_gcn_forward.5} parent=0 // pred_check
    %p259 = pneg %p14
  $region19: #{simple_gcn_forward.5} parent=0 // pred_check_branch
    %261 = sbr.rel (%p259) target = $region21
  $region20: #{simple_gcn_forward.5} parent=0 // pred_region
    %v262 = vld [vmem:[#allocation2] sm:$0xff]
    %v263 = vld [vmem:[#allocation2 + $0x8] sm:$0xff]
    %v264 = vld [vmem:[#allocation2 + $0x10] sm:$0xff]
    %v265 = vld [vmem:[#allocation2 + $0x18] sm:$0xff]
    %v266 = vld [vmem:[#allocation2 + $0x20] sm:$0xff]
    %v267 = vld [vmem:[#allocation2 + $0x28] sm:$0xff]
    %v268 = vld [vmem:[#allocation2 + $0x30] sm:$0xff]
    %v269 = vld [vmem:[#allocation2 + $0x38] sm:$0xff]
    %v270 = vld [vmem:[#allocation2 + $0x40] sm:$0xff]
    %v271 = vld [vmem:[#allocation2 + $0x48] sm:$0xff]
    %v272 = vld [vmem:[#allocation2 + $0x50] sm:$0xff]
    %v273 = vld [vmem:[#allocation2 + $0x58] sm:$0xff]
    %v274 = vld [vmem:[#allocation2 + $0x60] sm:$0xff]
    %v275 = vld [vmem:[#allocation2 + $0x68] sm:$0xff]
    %v276 = vld [vmem:[#allocation2 + $0x70] sm:$0xff]
    %v277 = vld [vmem:[#allocation2 + $0x78] sm:$0xff]
    %v278 = vld [vmem:[%s2] sm:$0x1]
    %v280 = vlaneseq
    %v281 = vshrl.u32 %v280, 7
    %v282 = vsub.s32 0, %v281
    %v283 = vrot.slane %v278, %v282
    %v285 = vadd.f32 %v262, %v283
    %v286 = vadd.f32 %v263, %v283
    %v287 = vadd.f32 %v264, %v283
    %v288 = vadd.f32 %v265, %v283
    %v289 = vadd.f32 %v266, %v283
    %v290 = vadd.f32 %v267, %v283
    %v291 = vadd.f32 %v268, %v283
    %v292 = vadd.f32 %v269, %v283
    %v293 = vadd.f32 %v270, %v283
    %v294 = vadd.f32 %v271, %v283
    %v295 = vadd.f32 %v272, %v283
    %v296 = vadd.f32 %v273, %v283
    %v297 = vadd.f32 %v274, %v283
    %v298 = vadd.f32 %v275, %v283
    %v299 = vadd.f32 %v276, %v283
    %v300 = vadd.f32 %v277, %v283
    %301 = vmax.xlane.f32.xlu0 %v285
    %v302 = vpop.xlane.xlu0 %301
    %303 = vmax.xlane.f32.xlu0 %v286
    %v304 = vpop.xlane.xlu0 %303
    %305 = vmax.xlane.f32.xlu0 %v287
    %v306 = vpop.xlane.xlu0 %305
    %307 = vmax.xlane.f32.xlu0 %v288
    %v308 = vpop.xlane.xlu0 %307
    %309 = vmax.xlane.f32.xlu0 %v289
    %v310 = vpop.xlane.xlu0 %309
    %311 = vmax.xlane.f32.xlu0 %v290
    %v312 = vpop.xlane.xlu0 %311
    %313 = vmax.xlane.f32.xlu0 %v291
    %v314 = vpop.xlane.xlu0 %313
    %315 = vmax.xlane.f32.xlu0 %v292
    %v316 = vpop.xlane.xlu0 %315
    %317 = vmax.xlane.f32.xlu0 %v293
    %v318 = vpop.xlane.xlu0 %317
    %319 = vmax.xlane.f32.xlu0 %v294
    %v320 = vpop.xlane.xlu0 %319
    %321 = vmax.xlane.f32.xlu0 %v295
    %v322 = vpop.xlane.xlu0 %321
    %323 = vmax.xlane.f32.xlu0 %v296
    %v324 = vpop.xlane.xlu0 %323
    %325 = vmax.xlane.f32.xlu0 %v297
    %v326 = vpop.xlane.xlu0 %325
    %327 = vmax.xlane.f32.xlu0 %v298
    %v328 = vpop.xlane.xlu0 %327
    %329 = vmax.xlane.f32.xlu0 %v299
    %v330 = vpop.xlane.xlu0 %329
    %331 = vmax.xlane.f32.xlu0 %v300
    %v332 = vpop.xlane.xlu0 %331
    %v333 = vsub.f32 %v285, %v302
    %v334 = vsub.f32 %v286, %v304
    %v335 = vsub.f32 %v287, %v306
    %v336 = vsub.f32 %v288, %v308
    %v337 = vsub.f32 %v289, %v310
    %v338 = vsub.f32 %v290, %v312
    %v339 = vsub.f32 %v291, %v314
    %v340 = vsub.f32 %v292, %v316
    %v341 = vsub.f32 %v293, %v318
    %v342 = vsub.f32 %v294, %v320
    %v343 = vsub.f32 %v295, %v322
    %v344 = vsub.f32 %v296, %v324
    %v345 = vsub.f32 %v297, %v326
    %v346 = vsub.f32 %v298, %v328
    %v347 = vsub.f32 %v299, %v330
    %v348 = vsub.f32 %v300, %v332
    %v349 = vmul.f32 %v333, 1.442695
    %v350 = vpow.pop %v349
    %v351 = vmul.f32 %v334, 1.442695
    %v352 = vpow.pop %v351
    %v353 = vmul.f32 %v335, 1.442695
    %v354 = vpow.pop %v353
    %v355 = vmul.f32 %v336, 1.442695
    %v356 = vpow.pop %v355
    %v357 = vmul.f32 %v337, 1.442695
    %v358 = vpow.pop %v357
    %v359 = vmul.f32 %v338, 1.442695
    %v360 = vpow.pop %v359
    %v361 = vmul.f32 %v339, 1.442695
    %v362 = vpow.pop %v361
    %v363 = vmul.f32 %v340, 1.442695
    %v364 = vpow.pop %v363
    %v365 = vmul.f32 %v341, 1.442695
    %v366 = vpow.pop %v365
    %v367 = vmul.f32 %v342, 1.442695
    %v368 = vpow.pop %v367
    %v369 = vmul.f32 %v343, 1.442695
    %v370 = vpow.pop %v369
    %v371 = vmul.f32 %v344, 1.442695
    %v372 = vpow.pop %v371
    %v373 = vmul.f32 %v345, 1.442695
    %v374 = vpow.pop %v373
    %v375 = vmul.f32 %v346, 1.442695
    %v376 = vpow.pop %v375
    %v377 = vmul.f32 %v347, 1.442695
    %v378 = vpow.pop %v377
    %v379 = vmul.f32 %v348, 1.442695
    %v380 = vpow.pop %v379
    %381 = vadd.xlane.f32.xlu0 %v350
    %v382 = vpop.xlane.xlu0 %381
    %383 = vadd.xlane.f32.xlu0 %v352
    %v384 = vpop.xlane.xlu0 %383
    %385 = vadd.xlane.f32.xlu0 %v354
    %v386 = vpop.xlane.xlu0 %385
    %387 = vadd.xlane.f32.xlu0 %v356
    %v388 = vpop.xlane.xlu0 %387
    %389 = vadd.xlane.f32.xlu0 %v358
    %v390 = vpop.xlane.xlu0 %389
    %391 = vadd.xlane.f32.xlu0 %v360
    %v392 = vpop.xlane.xlu0 %391
    %393 = vadd.xlane.f32.xlu0 %v362
    %v394 = vpop.xlane.xlu0 %393
    %395 = vadd.xlane.f32.xlu0 %v364
    %v396 = vpop.xlane.xlu0 %395
    %397 = vadd.xlane.f32.xlu0 %v366
    %v398 = vpop.xlane.xlu0 %397
    %399 = vadd.xlane.f32.xlu0 %v368
    %v400 = vpop.xlane.xlu0 %399
    %401 = vadd.xlane.f32.xlu0 %v370
    %v402 = vpop.xlane.xlu0 %401
    %403 = vadd.xlane.f32.xlu0 %v372
    %v404 = vpop.xlane.xlu0 %403
    %405 = vadd.xlane.f32.xlu0 %v374
    %v406 = vpop.xlane.xlu0 %405
    %407 = vadd.xlane.f32.xlu0 %v376
    %v408 = vpop.xlane.xlu0 %407
    %409 = vadd.xlane.f32.xlu0 %v378
    %v410 = vpop.xlane.xlu0 %409
    %411 = vadd.xlane.f32.xlu0 %v380
    %v412 = vpop.xlane.xlu0 %411
    %v413 = vlog2.pop %v382
    %v414 = vmul.f32 %v413, 0.6931472
    %v415 = vlog2.pop %v384
    %v416 = vmul.f32 %v415, 0.6931472
    %v417 = vlog2.pop %v386
    %v418 = vmul.f32 %v417, 0.6931472
    %v419 = vlog2.pop %v388
    %v420 = vmul.f32 %v419, 0.6931472
    %v421 = vlog2.pop %v390
    %v422 = vmul.f32 %v421, 0.6931472
    %v423 = vlog2.pop %v392
    %v424 = vmul.f32 %v423, 0.6931472
    %v425 = vlog2.pop %v394
    %v426 = vmul.f32 %v425, 0.6931472
    %v427 = vlog2.pop %v396
    %v428 = vmul.f32 %v427, 0.6931472
    %v429 = vlog2.pop %v398
    %v430 = vmul.f32 %v429, 0.6931472
    %v431 = vlog2.pop %v400
    %v432 = vmul.f32 %v431, 0.6931472
    %v433 = vlog2.pop %v402
    %v434 = vmul.f32 %v433, 0.6931472
    %v435 = vlog2.pop %v404
    %v436 = vmul.f32 %v435, 0.6931472
    %v437 = vlog2.pop %v406
    %v438 = vmul.f32 %v437, 0.6931472
    %v439 = vlog2.pop %v408
    %v440 = vmul.f32 %v439, 0.6931472
    %v441 = vlog2.pop %v410
    %v442 = vmul.f32 %v441, 0.6931472
    %v443 = vlog2.pop %v412
    %v444 = vmul.f32 %v443, 0.6931472
    %v445 = vsub.f32 %v333, %v414
    %v446 = vsub.f32 %v334, %v416
    %v447 = vsub.f32 %v335, %v418
    %v448 = vsub.f32 %v336, %v420
    %v449 = vsub.f32 %v337, %v422
    %v450 = vsub.f32 %v338, %v424
    %v451 = vsub.f32 %v339, %v426
    %v452 = vsub.f32 %v340, %v428
    %v453 = vsub.f32 %v341, %v430
    %v454 = vsub.f32 %v342, %v432
    %v455 = vsub.f32 %v343, %v434
    %v456 = vsub.f32 %v344, %v436
    %v457 = vsub.f32 %v345, %v438
    %v458 = vsub.f32 %v346, %v440
    %v459 = vsub.f32 %v347, %v442
    %v460 = vsub.f32 %v348, %v444
    %461 = vst [vmem:[%s3] sm:$0xff] %v445
    %462 = vst [vmem:[%s3 + $0x8] sm:$0xff] %v446
    %463 = vst [vmem:[%s3 + $0x10] sm:$0xff] %v447
    %464 = vst [vmem:[%s3 + $0x18] sm:$0xff] %v448
    %465 = vst [vmem:[%s3 + $0x20] sm:$0xff] %v449
    %466 = vst [vmem:[%s3 + $0x28] sm:$0xff] %v450
    %467 = vst [vmem:[%s3 + $0x30] sm:$0xff] %v451
    %468 = vst [vmem:[%s3 + $0x38] sm:$0xff] %v452
    %469 = vst [vmem:[%s3 + $0x40] sm:$0xff] %v453
    %470 = vst [vmem:[%s3 + $0x48] sm:$0xff] %v454
    %471 = vst [vmem:[%s3 + $0x50] sm:$0xff] %v455
    %472 = vst [vmem:[%s3 + $0x58] sm:$0xff] %v456
    %473 = vst [vmem:[%s3 + $0x60] sm:$0xff] %v457
    %474 = vst [vmem:[%s3 + $0x68] sm:$0xff] %v458
    %475 = vst [vmem:[%s3 + $0x70] sm:$0xff] %v459
    %476 = vst [vmem:[%s3 + $0x78] sm:$0xff] %v460
  $region21: #{simple_gcn_forward.5} parent=0 // pred_fallthru
    _
  // Predicated region
  $region22: #{simple_gcn_forward.5} parent=0 // pred_check
    _
  $region23: #{simple_gcn_forward.5} parent=0 // pred_check_branch
    %478 = sbr.rel (0) target = $region25
  $region24: #{simple_gcn_forward.5} parent=0 // pred_region
    _
  $region25: #{simple_gcn_forward.5} parent=0 // pred_fallthru
    _
  // Predicated region
  $region26: #{simple_gcn_forward.5} parent=0 // pred_check
    _
  $region27: #{simple_gcn_forward.5} parent=0 // pred_check_branch
    %480 = sbr.rel (0) target = $region29
  $region28: #{simple_gcn_forward.5} parent=0 // pred_region
    _
  $region29: #{simple_gcn_forward.5} parent=0 // pred_fallthru
    _

// kernel: simple_gcn_forward.4
$region0: #{simple_gcn_forward.4}
  #allocation0 [shape = 'u32[]', space=smem, size = 0x4, offset = 0x4, fixed_abs, tag = 'smem constant byte address 0x4 - core index']
  #allocation1 [shape = 'u32[144,128]{1,0:T(1,128)}', space=vmem, size = 0x12000, scoped, tag = 'internal scratch']
  #allocation2 [shape = 'f32[128,128]{1,0:T(8,128)}', space=vmem, size = 0x10000, scoped, tag = 'scratch operand']
  %s0 = inlined_call_operand.vmem [shape: f32[128,128], index: 0, kind: input, shape index: {}]
  %s1 = inlined_call_operand.vmem [shape: f32[128,128], index: 1, kind: input, shape index: {}]
  %s2 = inlined_call_operand.vmem [shape: f32[1,128], index: 2, kind: input, shape index: {}]
  %s3 = inlined_call_operand.vmem [shape: f32[128,128], index: 3, kind: output, shape index: {}]
  %s4 = sld [smem:[#allocation0]]
  $region30: #{simple_gcn_forward.4} parent=0
    _
  %s6 = ssub.s32 1, %s4
  %s7 = scalar_select 0, %s6, %s4
  // Predicated region
  $region2: #{simple_gcn_forward.4} parent=0 // pred_check
    _
  $region3: #{simple_gcn_forward.4} parent=0 // pred_check_branch
    %9 = sbr.rel (0) target = $region5
  $region4: #{simple_gcn_forward.4} parent=0 // pred_region
    _
  $region5: #{simple_gcn_forward.4} parent=0 // pred_fallthru
    _
  // Predicated region
  $region6: #{simple_gcn_forward.4} parent=0 // pred_check
    _
  $region7: #{simple_gcn_forward.4} parent=0 // pred_check_branch
    %11 = sbr.rel (0) target = $region9
  $region8: #{simple_gcn_forward.4} parent=0 // pred_region
    _
  $region9: #{simple_gcn_forward.4} parent=0 // pred_fallthru
    _
  // Predicated region
  $region10: #{simple_gcn_forward.4} parent=0 // pred_check
    _
  $region11: #{simple_gcn_forward.4} parent=0 // pred_check_branch
    %13 = sbr.rel (0) target = $region13
  $region12: #{simple_gcn_forward.4} parent=0 // pred_region
    _
  $region13: #{simple_gcn_forward.4} parent=0 // pred_fallthru
    _
  %p14 = scmp.eq.s32.totalorder 0, 0
  // Predicated region
  $region14: #{simple_gcn_forward.4} parent=0 // pred_check
    %p15 = pneg %p14
  $region15: #{simple_gcn_forward.4} parent=0 // pred_check_branch
    %17 = sbr.rel (%p15) target = $region17
  $region16: #{simple_gcn_forward.4} parent=0 // pred_region
    %18 = vst [vmem:[#allocation2] sm:$0xff] 0.0
    %19 = vst [vmem:[#allocation2 + $0x8] sm:$0xff] 0.0
    %20 = vst [vmem:[#allocation2 + $0x10] sm:$0xff] 0.0
    %21 = vst [vmem:[#allocation2 + $0x18] sm:$0xff] 0.0
    %22 = vst [vmem:[#allocation2 + $0x20] sm:$0xff] 0.0
    %23 = vst [vmem:[#allocation2 + $0x28] sm:$0xff] 0.0
    %24 = vst [vmem:[#allocation2 + $0x30] sm:$0xff] 0.0
    %25 = vst [vmem:[#allocation2 + $0x38] sm:$0xff] 0.0
    %26 = vst [vmem:[#allocation2 + $0x40] sm:$0xff] 0.0
    %27 = vst [vmem:[#allocation2 + $0x48] sm:$0xff] 0.0
    %28 = vst [vmem:[#allocation2 + $0x50] sm:$0xff] 0.0
    %29 = vst [vmem:[#allocation2 + $0x58] sm:$0xff] 0.0
    %30 = vst [vmem:[#allocation2 + $0x60] sm:$0xff] 0.0
    %31 = vst [vmem:[#allocation2 + $0x68] sm:$0xff] 0.0
    %32 = vst [vmem:[#allocation2 + $0x70] sm:$0xff] 0.0
    %33 = vst [vmem:[#allocation2 + $0x78] sm:$0xff] 0.0
  $region17: #{simple_gcn_forward.4} parent=0 // pred_fallthru
    _
  %v34 = vld [vmem:[#allocation2] sm:$0xff]
  %v35 = vld [vmem:[#allocation2 + $0x8] sm:$0xff]
  %v36 = vld [vmem:[#allocation2 + $0x10] sm:$0xff]
  %v37 = vld [vmem:[#allocation2 + $0x18] sm:$0xff]
  %v38 = vld [vmem:[#allocation2 + $0x20] sm:$0xff]
  %v39 = vld [vmem:[#allocation2 + $0x28] sm:$0xff]
  %v40 = vld [vmem:[#allocation2 + $0x30] sm:$0xff]
  %v41 = vld [vmem:[#allocation2 + $0x38] sm:$0xff]
  %v42 = vld [vmem:[#allocation2 + $0x40] sm:$0xff]
  %v43 = vld [vmem:[#allocation2 + $0x48] sm:$0xff]
  %v44 = vld [vmem:[#allocation2 + $0x50] sm:$0xff]
  %v45 = vld [vmem:[#allocation2 + $0x58] sm:$0xff]
  %v46 = vld [vmem:[#allocation2 + $0x60] sm:$0xff]
  %v47 = vld [vmem:[#allocation2 + $0x68] sm:$0xff]
  %v48 = vld [vmem:[#allocation2 + $0x70] sm:$0xff]
  %v49 = vld [vmem:[#allocation2 + $0x78] sm:$0xff]
  %v50 = vld [vmem:[%s0] sm:$0xff]
  %v51 = vld [vmem:[%s0 + $0x8] sm:$0xff]
  %v52 = vld [vmem:[%s0 + $0x10] sm:$0xff]
  %v53 = vld [vmem:[%s0 + $0x18] sm:$0xff]
  %v54 = vld [vmem:[%s0 + $0x20] sm:$0xff]
  %v55 = vld [vmem:[%s0 + $0x28] sm:$0xff]
  %v56 = vld [vmem:[%s0 + $0x30] sm:$0xff]
  %v57 = vld [vmem:[%s0 + $0x38] sm:$0xff]
  %v58 = vld [vmem:[%s0 + $0x40] sm:$0xff]
  %v59 = vld [vmem:[%s0 + $0x48] sm:$0xff]
  %v60 = vld [vmem:[%s0 + $0x50] sm:$0xff]
  %v61 = vld [vmem:[%s0 + $0x58] sm:$0xff]
  %v62 = vld [vmem:[%s0 + $0x60] sm:$0xff]
  %v63 = vld [vmem:[%s0 + $0x68] sm:$0xff]
  %v64 = vld [vmem:[%s0 + $0x70] sm:$0xff]
  %v65 = vld [vmem:[%s0 + $0x78] sm:$0xff]
  %v66 = vld [vmem:[%s1] sm:$0xff]
  %v67 = vld [vmem:[%s1 + $0x8] sm:$0xff]
  %v68 = vld [vmem:[%s1 + $0x10] sm:$0xff]
  %v69 = vld [vmem:[%s1 + $0x18] sm:$0xff]
  %v70 = vld [vmem:[%s1 + $0x20] sm:$0xff]
  %v71 = vld [vmem:[%s1 + $0x28] sm:$0xff]
  %v72 = vld [vmem:[%s1 + $0x30] sm:$0xff]
  %v73 = vld [vmem:[%s1 + $0x38] sm:$0xff]
  %v74 = vld [vmem:[%s1 + $0x40] sm:$0xff]
  %v75 = vld [vmem:[%s1 + $0x48] sm:$0xff]
  %v76 = vld [vmem:[%s1 + $0x50] sm:$0xff]
  %v77 = vld [vmem:[%s1 + $0x58] sm:$0xff]
  %v78 = vld [vmem:[%s1 + $0x60] sm:$0xff]
  %v79 = vld [vmem:[%s1 + $0x68] sm:$0xff]
  %v80 = vld [vmem:[%s1 + $0x70] sm:$0xff]
  %v81 = vld [vmem:[%s1 + $0x78] sm:$0xff]
  %82 = vmatprep.subr.mxu0 0.0
  %83 = vmatpush1.msra.mxu0 %v66
  %84 = vmatprep.subr.mxu0 0.0
  %85 = vmatpush1.msra.mxu0 %v67
  %86 = vmatprep.subr.mxu0 0.0
  %87 = vmatpush1.msra.mxu0 %v68
  %88 = vmatprep.subr.mxu0 0.0
  %89 = vmatpush1.msra.mxu0 %v69
  %90 = vmatprep.subr.mxu0 0.0
  %91 = vmatpush1.msra.mxu0 %v70
  %92 = vmatprep.subr.mxu0 0.0
  %93 = vmatpush1.msra.mxu0 %v71
  %94 = vmatprep.subr.mxu0 0.0
  %95 = vmatpush1.msra.mxu0 %v72
  %96 = vmatprep.subr.mxu0 0.0
  %97 = vmatpush1.msra.mxu0 %v73
  %98 = vmatprep.subr.mxu0 0.0
  %99 = vmatpush1.msra.mxu0 %v74
  %100 = vmatprep.subr.mxu0 0.0
  %101 = vmatpush1.msra.mxu0 %v75
  %102 = vmatprep.subr.mxu0 0.0
  %103 = vmatpush1.msra.mxu0 %v76
  %104 = vmatprep.subr.mxu0 0.0
  %105 = vmatpush1.msra.mxu0 %v77
  %106 = vmatprep.subr.mxu0 0.0
  %107 = vmatpush1.msra.mxu0 %v78
  %108 = vmatprep.subr.mxu0 0.0
  %109 = vmatpush1.msra.mxu0 %v79
  %110 = vmatprep.subr.mxu0 0.0
  %111 = vmatpush1.msra.mxu0 %v80
  %112 = vmatprep.subr.mxu0 0.0
  %113 = vmatpush1.msra.mxu0 %v81
  %114 = vmatprep.subr.mxu0 0.0
  %115 = vmatpush1.msra.mxu0 0.0
  %116 = vmatprep.subr.mxu0 0.0
  %117 = vmatpush1.msra.mxu0 0.0
  %118 = vmatprep.subr.mxu0 0.0
  %119 = vmatpush1.msra.mxu0 0.0
  %120 = vmatprep.subr.mxu0 0.0
  %121 = vmatpush1.msra.mxu0 0.0
  %122 = vmatprep.subr.mxu0 0.0
  %123 = vmatpush1.msra.mxu0 0.0
  %124 = vmatprep.subr.mxu0 0.0
  %125 = vmatpush1.msra.mxu0 0.0
  %126 = vmatprep.subr.mxu0 0.0
  %127 = vmatpush1.msra.mxu0 0.0
  %128 = vmatprep.subr.mxu0 0.0
  %129 = vmatpush1.msra.mxu0 0.0
  %130 = vmatprep.subr.mxu0 0.0
  %131 = vmatpush1.msra.mxu0 0.0
  %132 = vmatprep.subr.mxu0 0.0
  %133 = vmatpush1.msra.mxu0 0.0
  %134 = vmatprep.subr.mxu0 0.0
  %135 = vmatpush1.msra.mxu0 0.0
  %136 = vmatprep.subr.mxu0 0.0
  %137 = vmatpush1.msra.mxu0 0.0
  %138 = vmatprep.subr.mxu0 0.0
  %139 = vmatpush1.msra.mxu0 0.0
  %140 = vmatprep.subr.mxu0 0.0
  %141 = vmatpush1.msra.mxu0 0.0
  %142 = vmatprep.subr.mxu0 0.0
  %143 = vmatpush1.msra.mxu0 0.0
  %144 = vmatprep.subr.mxu0 0.0
  %145 = vmatpush1.msra.mxu0 0.0
  %146 = vmatprep.mubr.f32.mxu0 0.0
  %147 = vmatmul.mubr.f32.gmra.mrb[0].mxu0 %v50
  %v148 = vpop.f32.mrb[0].mxu0
  %v149 = vadd.f32 0.0, %v148
  %v150 = vpop.f32.mrb[0].mxu0
  %151 = vmatprep.mubr.f32.mxu0 0.0
  %152 = vmatmul.mubr.f32.gmra.mrb[0].mxu0 %v51
  %v153 = vpop.f32.mrb[0].mxu0
  %v154 = vadd.f32 0.0, %v153
  %v155 = vpop.f32.mrb[0].mxu0
  %156 = vmatprep.mubr.f32.mxu0 0.0
  %157 = vmatmul.mubr.f32.gmra.mrb[0].mxu0 %v52
  %v158 = vpop.f32.mrb[0].mxu0
  %v159 = vadd.f32 0.0, %v158
  %v160 = vpop.f32.mrb[0].mxu0
  %161 = vmatprep.mubr.f32.mxu0 0.0
  %162 = vmatmul.mubr.f32.gmra.mrb[0].mxu0 %v53
  %v163 = vpop.f32.mrb[0].mxu0
  %v164 = vadd.f32 0.0, %v163
  %v165 = vpop.f32.mrb[0].mxu0
  %166 = vmatprep.mubr.f32.mxu0 0.0
  %167 = vmatmul.mubr.f32.gmra.mrb[0].mxu0 %v54
  %v168 = vpop.f32.mrb[0].mxu0
  %v169 = vadd.f32 0.0, %v168
  %v170 = vpop.f32.mrb[0].mxu0
  %171 = vmatprep.mubr.f32.mxu0 0.0
  %172 = vmatmul.mubr.f32.gmra.mrb[0].mxu0 %v55
  %v173 = vpop.f32.mrb[0].mxu0
  %v174 = vadd.f32 0.0, %v173
  %v175 = vpop.f32.mrb[0].mxu0
  %176 = vmatprep.mubr.f32.mxu0 0.0
  %177 = vmatmul.mubr.f32.gmra.mrb[0].mxu0 %v56
  %v178 = vpop.f32.mrb[0].mxu0
  %v179 = vadd.f32 0.0, %v178
  %v180 = vpop.f32.mrb[0].mxu0
  %181 = vmatprep.mubr.f32.mxu0 0.0
  %182 = vmatmul.mubr.f32.gmra.mrb[0].mxu0 %v57
  %v183 = vpop.f32.mrb[0].mxu0
  %v184 = vadd.f32 0.0, %v183
  %v185 = vpop.f32.mrb[0].mxu0
  %186 = vmatprep.mubr.f32.mxu0 0.0
  %187 = vmatmul.mubr.f32.gmra.mrb[0].mxu0 %v58
  %v188 = vpop.f32.mrb[0].mxu0
  %v189 = vadd.f32 0.0, %v188
  %v190 = vpop.f32.mrb[0].mxu0
  %191 = vmatprep.mubr.f32.mxu0 0.0
  %192 = vmatmul.mubr.f32.gmra.mrb[0].mxu0 %v59
  %v193 = vpop.f32.mrb[0].mxu0
  %v194 = vadd.f32 0.0, %v193
  %v195 = vpop.f32.mrb[0].mxu0
  %196 = vmatprep.mubr.f32.mxu0 0.0
  %197 = vmatmul.mubr.f32.gmra.mrb[0].mxu0 %v60
  %v198 = vpop.f32.mrb[0].mxu0
  %v199 = vadd.f32 0.0, %v198
  %v200 = vpop.f32.mrb[0].mxu0
  %201 = vmatprep.mubr.f32.mxu0 0.0
  %202 = vmatmul.mubr.f32.gmra.mrb[0].mxu0 %v61
  %v203 = vpop.f32.mrb[0].mxu0
  %v204 = vadd.f32 0.0, %v203
  %v205 = vpop.f32.mrb[0].mxu0
  %206 = vmatprep.mubr.f32.mxu0 0.0
  %207 = vmatmul.mubr.f32.gmra.mrb[0].mxu0 %v62
  %v208 = vpop.f32.mrb[0].mxu0
  %v209 = vadd.f32 0.0, %v208
  %v210 = vpop.f32.mrb[0].mxu0
  %211 = vmatprep.mubr.f32.mxu0 0.0
  %212 = vmatmul.mubr.f32.gmra.mrb[0].mxu0 %v63
  %v213 = vpop.f32.mrb[0].mxu0
  %v214 = vadd.f32 0.0, %v213
  %v215 = vpop.f32.mrb[0].mxu0
  %216 = vmatprep.mubr.f32.mxu0 0.0
  %217 = vmatmul.mubr.f32.gmra.mrb[0].mxu0 %v64
  %v218 = vpop.f32.mrb[0].mxu0
  %v219 = vadd.f32 0.0, %v218
  %v220 = vpop.f32.mrb[0].mxu0
  %221 = vmatprep.mubr.f32.mxu0 0.0
  %222 = vmatmul.mubr.f32.gmra.mrb[0].mxu0 %v65
  %v223 = vpop.f32.mrb[0].mxu0
  %v224 = vadd.f32 0.0, %v223
  %v225 = vpop.f32.mrb[0].mxu0
  %226 = vdwg.mxu0
  %v227 = vadd.f32 %v34, %v149
  %v228 = vadd.f32 %v35, %v154
  %v229 = vadd.f32 %v36, %v159
  %v230 = vadd.f32 %v37, %v164
  %v231 = vadd.f32 %v38, %v169
  %v232 = vadd.f32 %v39, %v174
  %v233 = vadd.f32 %v40, %v179
  %v234 = vadd.f32 %v41, %v184
  %v235 = vadd.f32 %v42, %v189
  %v236 = vadd.f32 %v43, %v194
  %v237 = vadd.f32 %v44, %v199
  %v238 = vadd.f32 %v45, %v204
  %v239 = vadd.f32 %v46, %v209
  %v240 = vadd.f32 %v47, %v214
  %v241 = vadd.f32 %v48, %v219
  %v242 = vadd.f32 %v49, %v224
  %243 = vst [vmem:[#allocation2] sm:$0xff] %v227
  %244 = vst [vmem:[#allocation2 + $0x8] sm:$0xff] %v228
  %245 = vst [vmem:[#allocation2 + $0x10] sm:$0xff] %v229
  %246 = vst [vmem:[#allocation2 + $0x18] sm:$0xff] %v230
  %247 = vst [vmem:[#allocation2 + $0x20] sm:$0xff] %v231
  %248 = vst [vmem:[#allocation2 + $0x28] sm:$0xff] %v232
  %249 = vst [vmem:[#allocation2 + $0x30] sm:$0xff] %v233
  %250 = vst [vmem:[#allocation2 + $0x38] sm:$0xff] %v234
  %251 = vst [vmem:[#allocation2 + $0x40] sm:$0xff] %v235
  %252 = vst [vmem:[#allocation2 + $0x48] sm:$0xff] %v236
  %253 = vst [vmem:[#allocation2 + $0x50] sm:$0xff] %v237
  %254 = vst [vmem:[#allocation2 + $0x58] sm:$0xff] %v238
  %255 = vst [vmem:[#allocation2 + $0x60] sm:$0xff] %v239
  %256 = vst [vmem:[#allocation2 + $0x68] sm:$0xff] %v240
  %257 = vst [vmem:[#allocation2 + $0x70] sm:$0xff] %v241
  %258 = vst [vmem:[#allocation2 + $0x78] sm:$0xff] %v242
  // Predicated region
  $region18: #{simple_gcn_forward.4} parent=0 // pred_check
    %p259 = pneg %p14
  $region19: #{simple_gcn_forward.4} parent=0 // pred_check_branch
    %261 = sbr.rel (%p259) target = $region21
  $region20: #{simple_gcn_forward.4} parent=0 // pred_region
    %v262 = vld [vmem:[#allocation2] sm:$0xff]
    %v263 = vld [vmem:[#allocation2 + $0x8] sm:$0xff]
    %v264 = vld [vmem:[#allocation2 + $0x10] sm:$0xff]
    %v265 = vld [vmem:[#allocation2 + $0x18] sm:$0xff]
    %v266 = vld [vmem:[#allocation2 + $0x20] sm:$0xff]
    %v267 = vld [vmem:[#allocation2 + $0x28] sm:$0xff]
    %v268 = vld [vmem:[#allocation2 + $0x30] sm:$0xff]
    %v269 = vld [vmem:[#allocation2 + $0x38] sm:$0xff]
    %v270 = vld [vmem:[#allocation2 + $0x40] sm:$0xff]
    %v271 = vld [vmem:[#allocation2 + $0x48] sm:$0xff]
    %v272 = vld [vmem:[#allocation2 + $0x50] sm:$0xff]
    %v273 = vld [vmem:[#allocation2 + $0x58] sm:$0xff]
    %v274 = vld [vmem:[#allocation2 + $0x60] sm:$0xff]
    %v275 = vld [vmem:[#allocation2 + $0x68] sm:$0xff]
    %v276 = vld [vmem:[#allocation2 + $0x70] sm:$0xff]
    %v277 = vld [vmem:[#allocation2 + $0x78] sm:$0xff]
    %278 = vst [vmem:[%s3] sm:$0xff] %v262
    %279 = vst [vmem:[%s3 + $0x8] sm:$0xff] %v263
    %280 = vst [vmem:[%s3 + $0x10] sm:$0xff] %v264
    %281 = vst [vmem:[%s3 + $0x18] sm:$0xff] %v265
    %282 = vst [vmem:[%s3 + $0x20] sm:$0xff] %v266
    %283 = vst [vmem:[%s3 + $0x28] sm:$0xff] %v267
    %284 = vst [vmem:[%s3 + $0x30] sm:$0xff] %v268
    %285 = vst [vmem:[%s3 + $0x38] sm:$0xff] %v269
    %286 = vst [vmem:[%s3 + $0x40] sm:$0xff] %v270
    %287 = vst [vmem:[%s3 + $0x48] sm:$0xff] %v271
    %288 = vst [vmem:[%s3 + $0x50] sm:$0xff] %v272
    %289 = vst [vmem:[%s3 + $0x58] sm:$0xff] %v273
    %290 = vst [vmem:[%s3 + $0x60] sm:$0xff] %v274
    %291 = vst [vmem:[%s3 + $0x68] sm:$0xff] %v275
    %292 = vst [vmem:[%s3 + $0x70] sm:$0xff] %v276
    %293 = vst [vmem:[%s3 + $0x78] sm:$0xff] %v277
  $region21: #{simple_gcn_forward.4} parent=0 // pred_fallthru
    _
  // Predicated region
  $region22: #{simple_gcn_forward.4} parent=0 // pred_check
    _
  $region23: #{simple_gcn_forward.4} parent=0 // pred_check_branch
    %295 = sbr.rel (0) target = $region25
  $region24: #{simple_gcn_forward.4} parent=0 // pred_region
    _
  $region25: #{simple_gcn_forward.4} parent=0 // pred_fallthru
    _
  // Predicated region
  $region26: #{simple_gcn_forward.4} parent=0 // pred_check
    _
  $region27: #{simple_gcn_forward.4} parent=0 // pred_check_branch
    %297 = sbr.rel (0) target = $region29
  $region28: #{simple_gcn_forward.4} parent=0 // pred_region
    _
  $region29: #{simple_gcn_forward.4} parent=0 // pred_fallthru
    _

// kernel: simple_gcn_forward.3
$region0: #{simple_gcn_forward.3}
  #allocation0 [shape = 'u32[]', space=smem, size = 0x4, offset = 0x4, fixed_abs, tag = 'smem constant byte address 0x4 - core index']
  #allocation1 [shape = 'u32[144,128]{1,0:T(1,128)}', space=vmem, size = 0x12000, scoped, tag = 'internal scratch']
  %s0 = inlined_call_operand.vmem [shape: f32[128,128], index: 0, kind: input, shape index: {}]
  %s1 = inlined_call_operand.vmem [shape: f32[128,128], index: 1, kind: input, shape index: {}]
  %s2 = inlined_call_operand.vmem [shape: f32[128,128], index: 2, kind: output, shape index: {}]
  %s3 = sld [smem:[#allocation0]]
  $region18: #{simple_gcn_forward.3} parent=0
    _
  %s5 = ssub.s32 1, %s3
  %s6 = scalar_select 0, %s5, %s3
  // Predicated region
  $region2: #{simple_gcn_forward.3} parent=0 // pred_check
    _
  $region3: #{simple_gcn_forward.3} parent=0 // pred_check_branch
    %8 = sbr.rel (0) target = $region5
  $region4: #{simple_gcn_forward.3} parent=0 // pred_region
    _
  $region5: #{simple_gcn_forward.3} parent=0 // pred_fallthru
    _
  // Predicated region
  $region6: #{simple_gcn_forward.3} parent=0 // pred_check
    _
  $region7: #{simple_gcn_forward.3} parent=0 // pred_check_branch
    %10 = sbr.rel (0) target = $region9
  $region8: #{simple_gcn_forward.3} parent=0 // pred_region
    _
  $region9: #{simple_gcn_forward.3} parent=0 // pred_fallthru
    _
  %v11 = vld [vmem:[%s0] sm:$0xff]
  %v12 = vld [vmem:[%s0 + $0x8] sm:$0xff]
  %v13 = vld [vmem:[%s0 + $0x10] sm:$0xff]
  %v14 = vld [vmem:[%s0 + $0x18] sm:$0xff]
  %v15 = vld [vmem:[%s0 + $0x20] sm:$0xff]
  %v16 = vld [vmem:[%s0 + $0x28] sm:$0xff]
  %v17 = vld [vmem:[%s0 + $0x30] sm:$0xff]
  %v18 = vld [vmem:[%s0 + $0x38] sm:$0xff]
  %v19 = vld [vmem:[%s0 + $0x40] sm:$0xff]
  %v20 = vld [vmem:[%s0 + $0x48] sm:$0xff]
  %v21 = vld [vmem:[%s0 + $0x50] sm:$0xff]
  %v22 = vld [vmem:[%s0 + $0x58] sm:$0xff]
  %v23 = vld [vmem:[%s0 + $0x60] sm:$0xff]
  %v24 = vld [vmem:[%s0 + $0x68] sm:$0xff]
  %v25 = vld [vmem:[%s0 + $0x70] sm:$0xff]
  %v26 = vld [vmem:[%s0 + $0x78] sm:$0xff]
  %v27 = vld [vmem:[%s1] sm:$0xff]
  %v28 = vld [vmem:[%s1 + $0x8] sm:$0xff]
  %v29 = vld [vmem:[%s1 + $0x10] sm:$0xff]
  %v30 = vld [vmem:[%s1 + $0x18] sm:$0xff]
  %v31 = vld [vmem:[%s1 + $0x20] sm:$0xff]
  %v32 = vld [vmem:[%s1 + $0x28] sm:$0xff]
  %v33 = vld [vmem:[%s1 + $0x30] sm:$0xff]
  %v34 = vld [vmem:[%s1 + $0x38] sm:$0xff]
  %v35 = vld [vmem:[%s1 + $0x40] sm:$0xff]
  %v36 = vld [vmem:[%s1 + $0x48] sm:$0xff]
  %v37 = vld [vmem:[%s1 + $0x50] sm:$0xff]
  %v38 = vld [vmem:[%s1 + $0x58] sm:$0xff]
  %v39 = vld [vmem:[%s1 + $0x60] sm:$0xff]
  %v40 = vld [vmem:[%s1 + $0x68] sm:$0xff]
  %v41 = vld [vmem:[%s1 + $0x70] sm:$0xff]
  %v42 = vld [vmem:[%s1 + $0x78] sm:$0xff]
  %43 = vmatprep.subr.mxu0 0.0
  %44 = vmatpush1.msra.mxu0 %v27
  %45 = vmatprep.subr.mxu0 0.0
  %46 = vmatpush1.msra.mxu0 %v28
  %47 = vmatprep.subr.mxu0 0.0
  %48 = vmatpush1.msra.mxu0 %v29
  %49 = vmatprep.subr.mxu0 0.0
  %50 = vmatpush1.msra.mxu0 %v30
  %51 = vmatprep.subr.mxu0 0.0
  %52 = vmatpush1.msra.mxu0 %v31
  %53 = vmatprep.subr.mxu0 0.0
  %54 = vmatpush1.msra.mxu0 %v32
  %55 = vmatprep.subr.mxu0 0.0
  %56 = vmatpush1.msra.mxu0 %v33
  %57 = vmatprep.subr.mxu0 0.0
  %58 = vmatpush1.msra.mxu0 %v34
  %59 = vmatprep.subr.mxu0 0.0
  %60 = vmatpush1.msra.mxu0 %v35
  %61 = vmatprep.subr.mxu0 0.0
  %62 = vmatpush1.msra.mxu0 %v36
  %63 = vmatprep.subr.mxu0 0.0
  %64 = vmatpush1.msra.mxu0 %v37
  %65 = vmatprep.subr.mxu0 0.0
  %66 = vmatpush1.msra.mxu0 %v38
  %67 = vmatprep.subr.mxu0 0.0
  %68 = vmatpush1.msra.mxu0 %v39
  %69 = vmatprep.subr.mxu0 0.0
  %70 = vmatpush1.msra.mxu0 %v40
  %71 = vmatprep.subr.mxu0 0.0
  %72 = vmatpush1.msra.mxu0 %v41
  %73 = vmatprep.subr.mxu0 0.0
  %74 = vmatpush1.msra.mxu0 %v42
  %75 = vmatprep.subr.mxu0 0.0
  %76 = vmatpush1.msra.mxu0 0.0
  %77 = vmatprep.subr.mxu0 0.0
  %78 = vmatpush1.msra.mxu0 0.0
  %79 = vmatprep.subr.mxu0 0.0
  %80 = vmatpush1.msra.mxu0 0.0
  %81 = vmatprep.subr.mxu0 0.0
  %82 = vmatpush1.msra.mxu0 0.0
  %83 = vmatprep.subr.mxu0 0.0
  %84 = vmatpush1.msra.mxu0 0.0
  %85 = vmatprep.subr.mxu0 0.0
  %86 = vmatpush1.msra.mxu0 0.0
  %87 = vmatprep.subr.mxu0 0.0
  %88 = vmatpush1.msra.mxu0 0.0
  %89 = vmatprep.subr.mxu0 0.0
  %90 = vmatpush1.msra.mxu0 0.0
  %91 = vmatprep.subr.mxu0 0.0
  %92 = vmatpush1.msra.mxu0 0.0
  %93 = vmatprep.subr.mxu0 0.0
  %94 = vmatpush1.msra.mxu0 0.0
  %95 = vmatprep.subr.mxu0 0.0
  %96 = vmatpush1.msra.mxu0 0.0
  %97 = vmatprep.subr.mxu0 0.0
  %98 = vmatpush1.msra.mxu0 0.0
  %99 = vmatprep.subr.mxu0 0.0
  %100 = vmatpush1.msra.mxu0 0.0
  %101 = vmatprep.subr.mxu0 0.0
  %102 = vmatpush1.msra.mxu0 0.0
  %103 = vmatprep.subr.mxu0 0.0
  %104 = vmatpush1.msra.mxu0 0.0
  %105 = vmatprep.subr.mxu0 0.0
  %106 = vmatpush1.msra.mxu0 0.0
  %107 = vmatprep.mubr.f32.mxu0 0.0
  %108 = vmatmul.mubr.f32.gmra.mrb[0].mxu0 %v11
  %v109 = vpop.f32.mrb[0].mxu0
  %v110 = vadd.f32 0.0, %v109
  %v111 = vpop.f32.mrb[0].mxu0
  %112 = vmatprep.mubr.f32.mxu0 0.0
  %113 = vmatmul.mubr.f32.gmra.mrb[0].mxu0 %v12
  %v114 = vpop.f32.mrb[0].mxu0
  %v115 = vadd.f32 0.0, %v114
  %v116 = vpop.f32.mrb[0].mxu0
  %117 = vmatprep.mubr.f32.mxu0 0.0
  %118 = vmatmul.mubr.f32.gmra.mrb[0].mxu0 %v13
  %v119 = vpop.f32.mrb[0].mxu0
  %v120 = vadd.f32 0.0, %v119
  %v121 = vpop.f32.mrb[0].mxu0
  %122 = vmatprep.mubr.f32.mxu0 0.0
  %123 = vmatmul.mubr.f32.gmra.mrb[0].mxu0 %v14
  %v124 = vpop.f32.mrb[0].mxu0
  %v125 = vadd.f32 0.0, %v124
  %v126 = vpop.f32.mrb[0].mxu0
  %127 = vmatprep.mubr.f32.mxu0 0.0
  %128 = vmatmul.mubr.f32.gmra.mrb[0].mxu0 %v15
  %v129 = vpop.f32.mrb[0].mxu0
  %v130 = vadd.f32 0.0, %v129
  %v131 = vpop.f32.mrb[0].mxu0
  %132 = vmatprep.mubr.f32.mxu0 0.0
  %133 = vmatmul.mubr.f32.gmra.mrb[0].mxu0 %v16
  %v134 = vpop.f32.mrb[0].mxu0
  %v135 = vadd.f32 0.0, %v134
  %v136 = vpop.f32.mrb[0].mxu0
  %137 = vmatprep.mubr.f32.mxu0 0.0
  %138 = vmatmul.mubr.f32.gmra.mrb[0].mxu0 %v17
  %v139 = vpop.f32.mrb[0].mxu0
  %v140 = vadd.f32 0.0, %v139
  %v141 = vpop.f32.mrb[0].mxu0
  %142 = vmatprep.mubr.f32.mxu0 0.0
  %143 = vmatmul.mubr.f32.gmra.mrb[0].mxu0 %v18
  %v144 = vpop.f32.mrb[0].mxu0
  %v145 = vadd.f32 0.0, %v144
  %v146 = vpop.f32.mrb[0].mxu0
  %147 = vmatprep.mubr.f32.mxu0 0.0
  %148 = vmatmul.mubr.f32.gmra.mrb[0].mxu0 %v19
  %v149 = vpop.f32.mrb[0].mxu0
  %v150 = vadd.f32 0.0, %v149
  %v151 = vpop.f32.mrb[0].mxu0
  %152 = vmatprep.mubr.f32.mxu0 0.0
  %153 = vmatmul.mubr.f32.gmra.mrb[0].mxu0 %v20
  %v154 = vpop.f32.mrb[0].mxu0
  %v155 = vadd.f32 0.0, %v154
  %v156 = vpop.f32.mrb[0].mxu0
  %157 = vmatprep.mubr.f32.mxu0 0.0
  %158 = vmatmul.mubr.f32.gmra.mrb[0].mxu0 %v21
  %v159 = vpop.f32.mrb[0].mxu0
  %v160 = vadd.f32 0.0, %v159
  %v161 = vpop.f32.mrb[0].mxu0
  %162 = vmatprep.mubr.f32.mxu0 0.0
  %163 = vmatmul.mubr.f32.gmra.mrb[0].mxu0 %v22
  %v164 = vpop.f32.mrb[0].mxu0
  %v165 = vadd.f32 0.0, %v164
  %v166 = vpop.f32.mrb[0].mxu0
  %167 = vmatprep.mubr.f32.mxu0 0.0
  %168 = vmatmul.mubr.f32.gmra.mrb[0].mxu0 %v23
  %v169 = vpop.f32.mrb[0].mxu0
  %v170 = vadd.f32 0.0, %v169
  %v171 = vpop.f32.mrb[0].mxu0
  %172 = vmatprep.mubr.f32.mxu0 0.0
  %173 = vmatmul.mubr.f32.gmra.mrb[0].mxu0 %v24
  %v174 = vpop.f32.mrb[0].mxu0
  %v175 = vadd.f32 0.0, %v174
  %v176 = vpop.f32.mrb[0].mxu0
  %177 = vmatprep.mubr.f32.mxu0 0.0
  %178 = vmatmul.mubr.f32.gmra.mrb[0].mxu0 %v25
  %v179 = vpop.f32.mrb[0].mxu0
  %v180 = vadd.f32 0.0, %v179
  %v181 = vpop.f32.mrb[0].mxu0
  %182 = vmatprep.mubr.f32.mxu0 0.0
  %183 = vmatmul.mubr.f32.gmra.mrb[0].mxu0 %v26
  %v184 = vpop.f32.mrb[0].mxu0
  %v185 = vadd.f32 0.0, %v184
  %v186 = vpop.f32.mrb[0].mxu0
  %187 = vdwg.mxu0
  %188 = vst [vmem:[%s2] sm:$0xff] %v110
  %189 = vst [vmem:[%s2 + $0x8] sm:$0xff] %v115
  %190 = vst [vmem:[%s2 + $0x10] sm:$0xff] %v120
  %191 = vst [vmem:[%s2 + $0x18] sm:$0xff] %v125
  %192 = vst [vmem:[%s2 + $0x20] sm:$0xff] %v130
  %193 = vst [vmem:[%s2 + $0x28] sm:$0xff] %v135
  %194 = vst [vmem:[%s2 + $0x30] sm:$0xff] %v140
  %195 = vst [vmem:[%s2 + $0x38] sm:$0xff] %v145
  %196 = vst [vmem:[%s2 + $0x40] sm:$0xff] %v150
  %197 = vst [vmem:[%s2 + $0x48] sm:$0xff] %v155
  %198 = vst [vmem:[%s2 + $0x50] sm:$0xff] %v160
  %199 = vst [vmem:[%s2 + $0x58] sm:$0xff] %v165
  %200 = vst [vmem:[%s2 + $0x60] sm:$0xff] %v170
  %201 = vst [vmem:[%s2 + $0x68] sm:$0xff] %v175
  %202 = vst [vmem:[%s2 + $0x70] sm:$0xff] %v180
  %203 = vst [vmem:[%s2 + $0x78] sm:$0xff] %v185
  // Predicated region
  $region10: #{simple_gcn_forward.3} parent=0 // pred_check
    _
  $region11: #{simple_gcn_forward.3} parent=0 // pred_check_branch
    %205 = sbr.rel (0) target = $region13
  $region12: #{simple_gcn_forward.3} parent=0 // pred_region
    _
  $region13: #{simple_gcn_forward.3} parent=0 // pred_fallthru
    _
  // Predicated region
  $region14: #{simple_gcn_forward.3} parent=0 // pred_check
    _
  $region15: #{simple_gcn_forward.3} parent=0 // pred_check_branch
    %207 = sbr.rel (0) target = $region17
  $region16: #{simple_gcn_forward.3} parent=0 // pred_region
    _
  $region17: #{simple_gcn_forward.3} parent=0 // pred_fallthru
    _

</llo_original>
